<compile_context>
chip_gen: v7x
topology: tpu7x:2x2x1
jax: 0.10.0
libtpu: 0.0.40
codegen_flags: <defaults>
</compile_context>

<pallas_src>
import math
from functools import partial
from typing import NamedTuple

import jax
import jax.numpy as jnp
from jax.experimental import pallas as pl
from jax.experimental.pallas import tpu as pltpu


def _round_up(x, m):
    return ((x + m - 1) // m) * m


def _cdiv(a, b):
    return -(-a // b)


def _pad_to(arr, shape):
    pads = [(0, t - s) for s, t in zip(arr.shape, shape)]
    if all(p == (0, 0) for p in pads):
        return arr
    return jnp.pad(arr, pads)


def _gelu(h, approximate):
    if approximate:
        # tanh approximation: transcendental goes to the EUP slot; far fewer
        # VALU ops than the erf polynomial (matters on v6e/v7x fast MXUs).
        c = 0.7978845608028654  # sqrt(2/pi)
        return 0.5 * h * (1.0 + jnp.tanh(c * (h + 0.044715 * (h * h * h))))
    # Exact erf-based GELU (matches torch.nn.GELU default). Lowers to a VPU
    # polynomial -- use only when bit-level fidelity is required.
    return 0.5 * h * (1.0 + jax.lax.erf(h * 0.7071067811865476))


# ----------------------------------------------------------------------------
# Kernels
# ----------------------------------------------------------------------------
def _mlp_kernel_resident(x_ref, w1_ref, b1_ref, w2_ref, b2_ref, o_ref, *,
                         compute_dtype, approximate_gelu):
    # Weights fully VMEM-resident (constant index_map); 1-D grid over M tiles.
    x = x_ref[...].astype(compute_dtype)          # cast in VMEM, no extra HBM pass
    h = jnp.dot(x, w1_ref[...], preferred_element_type=jnp.float32)
    h = _gelu(h + b1_ref[...], approximate_gelu)
    out = jnp.dot(h.astype(compute_dtype), w2_ref[...],
                  preferred_element_type=jnp.float32)
    o_ref[...] = (out + b2_ref[...]).astype(o_ref.dtype)


def _mlp_kernel_streamed(x_ref, w1_ref, b1_ref, w2_ref, b2_ref, o_ref, acc_ref, *,
                         compute_dtype, approximate_gelu):
    # Weight tiles streamed along the hidden axis; grid = (M tiles, H tiles).
    h_idx = pl.program_id(1)

    @pl.when(h_idx == 0)
    def _init():
        acc_ref[...] = jnp.zeros_like(acc_ref)

    x = x_ref[...].astype(compute_dtype)
    h = jnp.dot(x, w1_ref[...], preferred_element_type=jnp.float32)
    h = _gelu(h + b1_ref[...], approximate_gelu)
    acc_ref[...] += jnp.dot(h.astype(compute_dtype), w2_ref[...],
                            preferred_element_type=jnp.float32)

    @pl.when(h_idx == pl.num_programs(1) - 1)
    def _finalize():
        o_ref[...] = (acc_ref[...] + b2_ref[...]).astype(o_ref.dtype)


# ----------------------------------------------------------------------------
# Parameter prep (one-time pad + cast, hoisted out of the per-call path)
# ----------------------------------------------------------------------------
class MlpParams(NamedTuple):
    w1: jax.Array  # (d_in_p, h_p)   compute dtype (bf16 by default)
    b1: jax.Array  # (1, h_p)        f32 (added on the f32 accumulator path)
    w2: jax.Array  # (h_p, d_out_p)  compute dtype
    b2: jax.Array  # (1, d_out_p)    f32


def prepare_mlp_params(w1, b1, w2, b2, *, compute_dtype=jnp.bfloat16):
    """Pad feature dims to lane multiples (128) and cast weights once.

    Zero padding is exact for this MLP: padded hidden units give GELU(0)=0 and
    padded W2 rows are zero; padded output columns are sliced off.
    """
    d_in, hidden = w1.shape
    hidden2, d_out = w2.shape
    assert hidden == hidden2, "w1/w2 hidden dims mismatch"
    d_in_p = _round_up(d_in, 128)
    h_p = _round_up(hidden, 128)
    d_out_p = _round_up(d_out, 128)
    params = MlpParams(
        w1=_pad_to(jnp.asarray(w1, dtype=compute_dtype), (d_in_p, h_p)),
        b1=_pad_to(jnp.asarray(b1, dtype=jnp.float32).reshape(1, -1), (1, h_p)),
        w2=_pad_to(jnp.asarray(w2, dtype=compute_dtype), (h_p, d_out_p)),
        b2=_pad_to(jnp.asarray(b2, dtype=jnp.float32).reshape(1, -1), (1, d_out_p)),
    )
    return params, (d_in, hidden, d_out)


def _vmem_capacity_bytes():
    """Generation-aware VMEM capacity; conservative 64 MiB (v7x) fallback."""
    try:
        info = pltpu.get_tpu_info()
        for attr in ("vmem_capacity_bytes", "vmem_size_bytes", "vmem_bytes"):
            cap = getattr(info, attr, None)
            if cap:
                return int(cap)
    except Exception:
        pass
    return 64 * 1024 * 1024


# ----------------------------------------------------------------------------
# Forward
# ----------------------------------------------------------------------------
@partial(jax.jit,
         static_argnames=("out_features", "block_m", "block_h", "approximate_gelu"))
def mlp_forward(x, params: MlpParams, *, out_features, block_m=None, block_h=None,
                approximate_gelu=True):
    orig_dtype = x.dtype
    *lead, d_in = x.shape
    M = max(1, math.prod(lead))

    d_in_p, h_p = params.w1.shape
    _, d_out_p = params.w2.shape
    assert d_in <= d_in_p and out_features <= d_out_p

    compute_dtype = params.w1.dtype
    x_isz = jnp.dtype(orig_dtype).itemsize
    w_isz = jnp.dtype(compute_dtype).itemsize
    o_isz = x_isz
    sublane = 16 if orig_dtype == jnp.bfloat16 else 8

    # --- generation-aware VMEM budget (v5e/v6e: 128 MiB, v7x: 64 MiB) --------
    cap = _vmem_capacity_bytes()
    budget = min(int(cap * 0.72), cap - (16 << 20))
    vmem_limit = int(min(budget + (8 << 20), int(cap * 0.85)))

    def vmem_bytes(bm, bh):
        # Double-buffered in/out + weight tiles (conservative: even constant-
        # index weights counted twice), f32 accumulator (counted once), the f32
        # GELU intermediate + its compute-dtype copy, and the in-kernel x cast.
        return (2 * bm * d_in_p * x_isz          # x tiles
                + 2 * d_in_p * bh * w_isz        # W1 tiles
                + 2 * bh * 4                     # b1
                + 2 * bh * d_out_p * w_isz       # W2 tiles
                + 2 * d_out_p * 4                # b2
                + 2 * bm * d_out_p * o_isz       # out tiles
                + bm * d_out_p * 4               # f32 accumulator
                + bm * bh * 4                    # f32 GELU intermediate
                + bm * bh * w_isz                # compute-dtype copy of it
                + bm * d_in_p * w_isz)           # compute-dtype copy of x tile

    # --- tile selection -------------------------------------------------------
    auto_m = block_m is None
    if auto_m:
        block_m = 1024 if budget >= (80 << 20) else 512
    block_m = min(_round_up(M, sublane), max(sublane, _round_up(block_m, sublane)))

    # block_h must divide h_p so the pre-padded weights never need re-padding.
    # Largest fitting candidate is preferred -> full residency (block_h == h_p)
    # whenever the VMEM budget allows; candidates are 128-multiples (most are
    # 256-multiples for common dims, filling the v6e/v7x 256x256 MXU).
    h_cands = [c for c in range(h_p, 0, -128) if h_p % c == 0]
    req_h = h_p if block_h is None else max(128, min(h_p, _round_up(block_h, 128)))

    def pick_h(bm):
        for c in h_cands:
            if c <= req_h and vmem_bytes(bm, c) <= budget:
                return c
        return None

    bh = pick_h(block_m)
    while bh is None and block_m > sublane:
        block_m = max(sublane, _round_up(block_m // 2, sublane))
        bh = pick_h(block_m)
    block_h = bh if bh is not None else 128

    if auto_m:
        # Even number of M tiles so the "parallel" axis splits evenly across
        # the 2 TensorCores on v7x.
        gm = _cdiv(M, block_m)
        if gm > 1 and gm % 2 == 1:
            block_m = max(sublane, _round_up(_cdiv(M, gm + 1), sublane))

    m_p = _round_up(M, block_m)
    grid_m = m_p // block_m
    n_h = h_p // block_h

    # --- pad the activation (exact zero padding) ------------------------------
    x_p = _pad_to(x.reshape(M, d_in), (m_p, d_in_p))

    w_bytes = (params.w1.size + params.w2.size) * w_isz
    cost = pl.CostEstimate(
        flops=2 * m_p * h_p * (d_in_p + d_out_p),
        transcendentals=m_p * h_p,
        bytes_accessed=(m_p * d_in_p * x_isz
                        + w_bytes * (1 if n_h == 1 else grid_m)
                        + params.b1.size * 4 + params.b2.size * 4
                        + m_p * d_out_p * o_isz),
    )

    if n_h == 1:
        # Weight-resident path: W1/W2 fetched from HBM once, held in VMEM
        # across all M tiles (constant index_map => no re-DMA per step).
        kernel = partial(_mlp_kernel_resident, compute_dtype=compute_dtype,
                         approximate_gelu=approximate_gelu)
        grid = (grid_m,)
        in_specs = [
            pl.BlockSpec((block_m, d_in_p), lambda i: (i, 0)),       # x
            pl.BlockSpec((d_in_p, h_p), lambda i: (0, 0)),           # W1 (resident)
            pl.BlockSpec((1, h_p), lambda i: (0, 0)),                # b1
            pl.BlockSpec((h_p, d_out_p), lambda i: (0, 0)),          # W2 (resident)
            pl.BlockSpec((1, d_out_p), lambda i: (0, 0)),            # b2
        ]
        out_specs = pl.BlockSpec((block_m, d_out_p), lambda i: (i, 0))
        scratch_shapes = []
        dim_sem = ("parallel",)
    else:
        # Streamed path: hidden (reduction) axis last, f32 VMEM accumulator.
        kernel = partial(_mlp_kernel_streamed, compute_dtype=compute_dtype,
                         approximate_gelu=approximate_gelu)
        grid = (grid_m, n_h)
        in_specs = [
            pl.BlockSpec((block_m, d_in_p), lambda i, h: (i, 0)),    # x
            pl.BlockSpec((d_in_p, block_h), lambda i, h: (0, h)),    # W1 tile
            pl.BlockSpec((1, block_h), lambda i, h: (0, h)),         # b1 tile
            pl.BlockSpec((block_h, d_out_p), lambda i, h: (h, 0)),   # W2 tile
            pl.BlockSpec((1, d_out_p), lambda i, h: (0, 0)),         # b2
        ]
        out_specs = pl.BlockSpec((block_m, d_out_p), lambda i, h: (i, 0))
        scratch_shapes = [pltpu.VMEM((block_m, d_out_p), jnp.float32)]
        dim_sem = ("parallel", "arbitrary")

    out_p = pl.pallas_call(
        kernel,
        out_shape=jax.ShapeDtypeStruct((m_p, d_out_p), orig_dtype),
        grid_spec=pltpu.PrefetchScalarGridSpec(
            num_scalar_prefetch=0,
            grid=grid,
            in_specs=in_specs,
            out_specs=out_specs,
            scratch_shapes=scratch_shapes,
        ),
        compiler_params=pltpu.CompilerParams(
            dimension_semantics=dim_sem,
            vmem_limit_bytes=vmem_limit,
        ),
        cost_estimate=cost,
    )(x_p, params.w1, params.b1, params.w2, params.b2)

    return out_p[:M, :out_features].reshape(*lead, out_features)


def mlp_pallas(x, w1, b1, w2, b2, *, compute_dtype=jnp.bfloat16,
               approximate_gelu=True, block_m=None, block_h=None):
    """Convenience wrapper: pads/casts weights then runs the kernel.

    For repeated calls (e.g. inside a model), call `prepare_mlp_params` once
    and reuse `mlp_forward` so the weight cast/pad is not paid per call.
    """
    params, (_, _, d_out) = prepare_mlp_params(
        w1, b1, w2, b2, compute_dtype=compute_dtype)
    return mlp_forward(x, params, out_features=d_out, block_m=block_m,
                       block_h=block_h, approximate_gelu=approximate_gelu)


# ----------------------------------------------------------------------------
# Reference + init
# ----------------------------------------------------------------------------
def init_mlp_params(key, in_features, hidden_features, out_features,
                    dtype=jnp.float32):
    """Deterministic init mirroring nn.Linear's default (kaiming-uniform-ish)."""
    k1, k2, k3, k4 = jax.random.split(key, 4)
    lim1 = 1.0 / math.sqrt(in_features)
    lim2 = 1.0 / math.sqrt(hidden_features)
    w1 = jax.random.uniform(k1, (in_features, hidden_features), dtype, -lim1, lim1)
    b1 = jax.random.uniform(k2, (1, hidden_features), dtype, -lim1, lim1)
    w2 = jax.random.uniform(k3, (hidden_features, out_features), dtype, -lim2, lim2)
    b2 = jax.random.uniform(k4, (1, out_features), dtype, -lim2, lim2)
    return w1, b1, w2, b2


def mlp_reference(x, w1, b1, w2, b2):
    hp = jax.lax.Precision.HIGHEST
    h = jnp.einsum("...d,dh->...h", x, w1, precision=hp) + b1.reshape(-1)
    h = _gelu(h, approximate=False)                 # exact erf (nn.GELU default)
    return jnp.einsum("...h,ho->...o", h, w2, precision=hp) + b2.reshape(-1)


if __name__ == "__main__":
    key = jax.random.PRNGKey(0)
    kx, kp = jax.random.split(key)

    # Shapes consistent with the module: batch=2, seq=8, in=32, hidden=64, out=32.
    B, N, D_in, H, D_out = 2, 8, 32, 64, 32
    x = jax.random.normal(kx, (B, N, D_in), jnp.float32)
    w1, b1, w2, b2 = init_mlp_params(kp, D_in, H, D_out)
    ref = mlp_reference(x, w1, b1, w2, b2)

    # 1) Exact path (f32 MXU operands + erf GELU): faithful to the PyTorch module.
    out_exact = jax.block_until_ready(
        mlp_pallas(x, w1, b1, w2, b2,
                   compute_dtype=jnp.float32, approximate_gelu=False))
    assert out_exact.shape == (B, N, D_out)
    assert jnp.allclose(out_exact, ref, atol=1e-4, rtol=1e-4), "exact path mismatch"

    # 2) Default fast path (bf16 MXU operands, f32 accumulation, tanh GELU).
    out_fast = jax.block_until_ready(mlp_pallas(x, w1, b1, w2, b2))
    assert jnp.allclose(out_fast, ref, atol=5e-2, rtol=5e-2), "fast path mismatch"

    # 3) Multi-tile grid, streamed hidden axis (2-D grid + f32 accumulator), f32.
    kx2, kp2 = jax.random.split(jax.random.PRNGKey(1))
    B2, N2, Di2, H2, Do2 = 2, 128, 128, 256, 128
    x2 = jax.random.normal(kx2, (B2, N2, Di2), jnp.float32)
    p2 = init_mlp_params(kp2, Di2, H2, Do2)
    ref2 = mlp_reference(x2, *p2)
    out_stream = jax.block_until_ready(
        mlp_pallas(x2, *p2, compute_dtype=jnp.float32, approximate_gelu=False,
                   block_m=64, block_h=128))
    assert jnp.allclose(out_stream, ref2, atol=1e-3, rtol=1e-3), "streamed mismatch"

    # 4) Multi-tile grid, default fast path with fully VMEM-resident weights.
    out_res = jax.block_until_ready(mlp_pallas(x2, *p2, block_m=64))
    assert jnp.allclose(out_res, ref2, atol=5e-2, rtol=5e-2), "resident mismatch"

    print("KERNEL_OK")
</pallas_src>

<mosaic_0001>
module attributes {stable_mosaic.version = 11 : i64} {
  func.func @_mlp_kernel_resident(%arg0: i32, %arg1: memref<16x128xf32, #tpu.memory_space<vmem>>, %arg2: memref<128x128xf32, #tpu.memory_space<vmem>>, %arg3: memref<1x128xf32, #tpu.memory_space<vmem>>, %arg4: memref<128x128xf32, #tpu.memory_space<vmem>>, %arg5: memref<1x128xf32, #tpu.memory_space<vmem>>, %arg6: memref<16x128xf32, #tpu.memory_space<vmem>>) attributes {dimension_semantics = [#tpu.dimension_semantics<parallel>], iteration_bounds = array<i64: 1>, scalar_prefetch = 0 : i64, scratch_operands = 0 : i64, tpu.core_type = #tpu.core_type<tc>, window_params = [{transform_indices = @transform_0, window_bounds = array<i64: 16, 128>}, {pipeline_mode = #tpu.pipeline_mode<synchronous>, transform_indices = @transform_1, window_bounds = array<i64: 128, 128>}, {pipeline_mode = #tpu.pipeline_mode<synchronous>, transform_indices = @transform_2, window_bounds = array<i64: 1, 128>}, {pipeline_mode = #tpu.pipeline_mode<synchronous>, transform_indices = @transform_3, window_bounds = array<i64: 128, 128>}, {pipeline_mode = #tpu.pipeline_mode<synchronous>, transform_indices = @transform_4, window_bounds = array<i64: 1, 128>}, {transform_indices = @transform_5, window_bounds = array<i64: 16, 128>}]} {
    %c0 = arith.constant 0 : index
    %c0_0 = arith.constant 0 : index
    %0 = vector.load %arg1[%c0, %c0_0] : memref<16x128xf32, #tpu.memory_space<vmem>>, vector<16x128xf32>
    %c0_1 = arith.constant 0 : index
    %c0_2 = arith.constant 0 : index
    %1 = vector.load %arg2[%c0_1, %c0_2] : memref<128x128xf32, #tpu.memory_space<vmem>>, vector<128x128xf32>
    %cst = arith.constant dense<0.000000e+00> : vector<16x128xf32>
    %2 = tpu.matmul %0, %1, %cst {dimension_numbers = #tpu.dot_dimension_numbers<[1], [0], [0], [1], [0, 0, 1, 1], [], []>} : vector<16x128xf32>, vector<128x128xf32>, vector<16x128xf32> -> vector<16x128xf32>
    %c0_3 = arith.constant 0 : index
    %c0_4 = arith.constant 0 : index
    %3 = vector.load %arg3[%c0_3, %c0_4] : memref<1x128xf32, #tpu.memory_space<vmem>>, vector<1x128xf32>
    %4 = vector.broadcast %3 : vector<1x128xf32> to vector<16x128xf32>
    %5 = arith.addf %2, %4 : vector<16x128xf32>
    %cst_5 = arith.constant 5.000000e-01 : f32
    %6 = vector.broadcast %cst_5 : f32 to vector<16x128xf32>
    %7 = arith.mulf %6, %5 : vector<16x128xf32>
    %cst_6 = arith.constant 0.707106769 : f32
    %8 = vector.broadcast %cst_6 : f32 to vector<16x128xf32>
    %9 = arith.mulf %5, %8 : vector<16x128xf32>
    %10 = math.erf %9 : vector<16x128xf32>
    %cst_7 = arith.constant 1.000000e+00 : f32
    %11 = vector.broadcast %cst_7 : f32 to vector<16x128xf32>
    %12 = arith.addf %11, %10 : vector<16x128xf32>
    %13 = arith.mulf %7, %12 : vector<16x128xf32>
    %c0_8 = arith.constant 0 : index
    %c0_9 = arith.constant 0 : index
    %14 = vector.load %arg4[%c0_8, %c0_9] : memref<128x128xf32, #tpu.memory_space<vmem>>, vector<128x128xf32>
    %cst_10 = arith.constant dense<0.000000e+00> : vector<16x128xf32>
    %15 = tpu.matmul %13, %14, %cst_10 {dimension_numbers = #tpu.dot_dimension_numbers<[1], [0], [0], [1], [0, 0, 1, 1], [], []>} : vector<16x128xf32>, vector<128x128xf32>, vector<16x128xf32> -> vector<16x128xf32>
    %c0_11 = arith.constant 0 : index
    %c0_12 = arith.constant 0 : index
    %16 = vector.load %arg5[%c0_11, %c0_12] : memref<1x128xf32, #tpu.memory_space<vmem>>, vector<1x128xf32>
    %17 = vector.broadcast %16 : vector<1x128xf32> to vector<16x128xf32>
    %18 = arith.addf %15, %17 : vector<16x128xf32>
    %c0_13 = arith.constant 0 : index
    %c0_14 = arith.constant 0 : index
    %19 = vector.load %arg6[%c0_13, %c0_14] : memref<16x128xf32, #tpu.memory_space<vmem>>, vector<16x128xf32>
    tpu.vector_store %arg6[%c0_13, %c0_14], %18 {strides = array<i32>} : memref<16x128xf32, #tpu.memory_space<vmem>>, vector<16x128xf32>,
    return
  }
  func.func @transform_0(%arg0: i32) -> (i32, i32) {
    %c0_i32 = arith.constant 0 : i32
    %c0_i32_0 = arith.constant 0 : i32
    return %arg0, %c0_i32 : i32, i32
  }
  func.func @transform_1(%arg0: i32) -> (i32, i32) {
    %c0_i32 = arith.constant 0 : i32
    %c0_i32_0 = arith.constant 0 : i32
    %c0_i32_1 = arith.constant 0 : i32
    return %c0_i32, %c0_i32_0 : i32, i32
  }
  func.func @transform_2(%arg0: i32) -> (i32, i32) {
    %c0_i32 = arith.constant 0 : i32
    %c0_i32_0 = arith.constant 0 : i32
    %c0_i32_1 = arith.constant 0 : i32
    return %c0_i32, %c0_i32_0 : i32, i32
  }
  func.func @transform_3(%arg0: i32) -> (i32, i32) {
    %c0_i32 = arith.constant 0 : i32
    %c0_i32_0 = arith.constant 0 : i32
    %c0_i32_1 = arith.constant 0 : i32
    return %c0_i32, %c0_i32_0 : i32, i32
  }
  func.func @transform_4(%arg0: i32) -> (i32, i32) {
    %c0_i32 = arith.constant 0 : i32
    %c0_i32_0 = arith.constant 0 : i32
    %c0_i32_1 = arith.constant 0 : i32
    return %c0_i32, %c0_i32_0 : i32, i32
  }
  func.func @transform_5(%arg0: i32) -> (i32, i32) {
    %c0_i32 = arith.constant 0 : i32
    %c0_i32_0 = arith.constant 0 : i32
    return %arg0, %c0_i32 : i32, i32
  }
}

</mosaic_0001>

<llo_original>
// kernel: mlp_forward.1
$region0: #{mlp_forward.1}
  #allocation0 [shape = 'u32[]', space=smem, size = 0x4, offset = 0x4, fixed_abs, tag = 'smem constant byte address 0x4 - core index']
  #allocation1 [shape = 'u32[144,128]{1,0:T(1,128)}', space=vmem, size = 0x12000, scoped, tag = 'internal scratch']
  %s0 = inlined_call_operand.vmem [shape: f32[16,128], index: 0, kind: input, shape index: {}]
  %s1 = inlined_call_operand.hbm [shape: f32[128,128], index: 1, kind: input, shape index: {}]
  %s2 = inlined_call_operand.vmem [shape: f32[1,128], index: 2, kind: input, shape index: {}]
  %s3 = inlined_call_operand.hbm [shape: f32[128,128], index: 3, kind: input, shape index: {}]
  %s4 = inlined_call_operand.vmem [shape: f32[1,128], index: 4, kind: input, shape index: {}]
  %s5 = inlined_call_operand.vmem [shape: f32[16,128], index: 5, kind: output, shape index: {}]
  %s6 = sld [smem:[#allocation0]]
  $region38: #{mlp_forward.1} parent=0
    _
  %s8 = ssub.s32 1, %s6
  %s9 = scalar_select 0, %s8, %s6
  $region1: #{mlp_forward.1} parent=0
    #allocation2 [shape = 'u8[65536]{0}', space=vmem, size = 0x10000, scoped, tag = 'input window, operand 1, single buffered']
    #allocation3 [shape = 's32[1]{0}', space=sflag, size = 0x4, scoped, tag = 'scoped memory for mlp_forward.1']
    #allocation4 [shape = 'u8[65536]{0}', space=vmem, size = 0x10000, scoped, tag = 'input window, operand 3, single buffered']
    #allocation5 [shape = 's32[1]{0}', space=sflag, size = 0x4, scoped, tag = 'scoped memory for mlp_forward.1']
    %10 = vsyncpa [#allocation3], 0
    %11 = vsyncpa [#allocation5], 0
    // Predicated region
    $region2: #{mlp_forward.1} parent=1 // pred_check
      _
    $region3: #{mlp_forward.1} parent=1 // pred_check_branch
      %13 = sbr.rel (0) target = $region5
    $region4: #{mlp_forward.1} parent=1 // pred_region
      _
    $region5: #{mlp_forward.1} parent=1 // pred_fallthru
      _
    // Predicated region
    $region6: #{mlp_forward.1} parent=1 // pred_check
      _
    $region7: #{mlp_forward.1} parent=1 // pred_check_branch
      %15 = sbr.rel (0) target = $region9
    $region8: #{mlp_forward.1} parent=1 // pred_region
      %s17 = ssub.s32 2048, 2048
      %18 = vsyncadd [#allocation3], %s17
      %s19 = sshll.u32 [#allocation2], 4
      %s20 = int_to_ptr.vmem [resolvable:$true] %s19
      %25 = dma.hbm_to_vmem [thread:$0]  %s1, 2048, %s20, [#allocation3], 128, 128, 8
    $region9: #{mlp_forward.1} parent=1 // pred_fallthru
      _
    // Predicated region
    $region10: #{mlp_forward.1} parent=1 // pred_check
      _
    $region11: #{mlp_forward.1} parent=1 // pred_check_branch
      %27 = sbr.rel (0) target = $region13
    $region12: #{mlp_forward.1} parent=1 // pred_region
      _
    $region13: #{mlp_forward.1} parent=1 // pred_fallthru
      _
    // Predicated region
    $region14: #{mlp_forward.1} parent=1 // pred_check
      _
    $region15: #{mlp_forward.1} parent=1 // pred_check_branch
      %29 = sbr.rel (0) target = $region17
    $region16: #{mlp_forward.1} parent=1 // pred_region
      %s31 = ssub.s32 2048, 2048
      %32 = vsyncadd [#allocation5], %s31
      %s33 = sshll.u32 [#allocation4], 4
      %s34 = int_to_ptr.vmem [resolvable:$true] %s33
      %39 = dma.hbm_to_vmem [thread:$0]  %s3, 2048, %s34, [#allocation5], 128, 128, 8
    $region17: #{mlp_forward.1} parent=1 // pred_fallthru
      _
    // Predicated region
    $region18: #{mlp_forward.1} parent=1 // pred_check
      _
    $region19: #{mlp_forward.1} parent=1 // pred_check_branch
      %41 = sbr.rel (0) target = $region21
    $region20: #{mlp_forward.1} parent=1 // pred_region
      _
    $region21: #{mlp_forward.1} parent=1 // pred_fallthru
      _
    // Predicated region
    $region22: #{mlp_forward.1} parent=1 // pred_check
      _
    $region23: #{mlp_forward.1} parent=1 // pred_check_branch
      %43 = sbr.rel (0) target = $region25
    $region24: #{mlp_forward.1} parent=1 // pred_region
      %44 = dma.done [#allocation3], 2048
    $region25: #{mlp_forward.1} parent=1 // pred_fallthru
      _
    // Predicated region
    $region26: #{mlp_forward.1} parent=1 // pred_check
      _
    $region27: #{mlp_forward.1} parent=1 // pred_check_branch
      %46 = sbr.rel (0) target = $region29
    $region28: #{mlp_forward.1} parent=1 // pred_region
      %47 = dma.done [#allocation5], 2048
    $region29: #{mlp_forward.1} parent=1 // pred_fallthru
      _
    %v48 = vld [vmem:[%s0] sm:$0xff]
    %v49 = vld [vmem:[%s0 + $0x8] sm:$0xff]
    %v50 = vld [vmem:[#allocation2] sm:$0xff]
    %v51 = vld [vmem:[#allocation2 + $0x8] sm:$0xff]
    %v52 = vld [vmem:[#allocation2 + $0x10] sm:$0xff]
    %v53 = vld [vmem:[#allocation2 + $0x18] sm:$0xff]
    %v54 = vld [vmem:[#allocation2 + $0x20] sm:$0xff]
    %v55 = vld [vmem:[#allocation2 + $0x28] sm:$0xff]
    %v56 = vld [vmem:[#allocation2 + $0x30] sm:$0xff]
    %v57 = vld [vmem:[#allocation2 + $0x38] sm:$0xff]
    %v58 = vld [vmem:[#allocation2 + $0x40] sm:$0xff]
    %v59 = vld [vmem:[#allocation2 + $0x48] sm:$0xff]
    %v60 = vld [vmem:[#allocation2 + $0x50] sm:$0xff]
    %v61 = vld [vmem:[#allocation2 + $0x58] sm:$0xff]
    %v62 = vld [vmem:[#allocation2 + $0x60] sm:$0xff]
    %v63 = vld [vmem:[#allocation2 + $0x68] sm:$0xff]
    %v64 = vld [vmem:[#allocation2 + $0x70] sm:$0xff]
    %v65 = vld [vmem:[#allocation2 + $0x78] sm:$0xff]
    %v66 = vld [vmem:[%s2] sm:$0x1]
    %v68 = vlaneseq
    %v69 = vshrl.u32 %v68, 7
    %v70 = vsub.s32 0, %v69
    %v71 = vrot.slane %v66, %v70
    %73 = vmatprep.subr.mxu0 0.0
    %74 = vmatpush1.msra.mxu0 %v50
    %75 = vmatprep.subr.mxu0 0.0
    %76 = vmatpush1.msra.mxu0 %v51
    %77 = vmatprep.subr.mxu0 0.0
    %78 = vmatpush1.msra.mxu0 %v52
    %79 = vmatprep.subr.mxu0 0.0
    %80 = vmatpush1.msra.mxu0 %v53
    %81 = vmatprep.subr.mxu0 0.0
    %82 = vmatpush1.msra.mxu0 %v54
    %83 = vmatprep.subr.mxu0 0.0
    %84 = vmatpush1.msra.mxu0 %v55
    %85 = vmatprep.subr.mxu0 0.0
    %86 = vmatpush1.msra.mxu0 %v56
    %87 = vmatprep.subr.mxu0 0.0
    %88 = vmatpush1.msra.mxu0 %v57
    %89 = vmatprep.subr.mxu0 0.0
    %90 = vmatpush1.msra.mxu0 %v58
    %91 = vmatprep.subr.mxu0 0.0
    %92 = vmatpush1.msra.mxu0 %v59
    %93 = vmatprep.subr.mxu0 0.0
    %94 = vmatpush1.msra.mxu0 %v60
    %95 = vmatprep.subr.mxu0 0.0
    %96 = vmatpush1.msra.mxu0 %v61
    %97 = vmatprep.subr.mxu0 0.0
    %98 = vmatpush1.msra.mxu0 %v62
    %99 = vmatprep.subr.mxu0 0.0
    %100 = vmatpush1.msra.mxu0 %v63
    %101 = vmatprep.subr.mxu0 0.0
    %102 = vmatpush1.msra.mxu0 %v64
    %103 = vmatprep.subr.mxu0 0.0
    %104 = vmatpush1.msra.mxu0 %v65
    %105 = vmatprep.subr.mxu0 0.0
    %106 = vmatpush1.msra.mxu0 0.0
    %107 = vmatprep.subr.mxu0 0.0
    %108 = vmatpush1.msra.mxu0 0.0
    %109 = vmatprep.subr.mxu0 0.0
    %110 = vmatpush1.msra.mxu0 0.0
    %111 = vmatprep.subr.mxu0 0.0
    %112 = vmatpush1.msra.mxu0 0.0
    %113 = vmatprep.subr.mxu0 0.0
    %114 = vmatpush1.msra.mxu0 0.0
    %115 = vmatprep.subr.mxu0 0.0
    %116 = vmatpush1.msra.mxu0 0.0
    %117 = vmatprep.subr.mxu0 0.0
    %118 = vmatpush1.msra.mxu0 0.0
    %119 = vmatprep.subr.mxu0 0.0
    %120 = vmatpush1.msra.mxu0 0.0
    %121 = vmatprep.subr.mxu0 0.0
    %122 = vmatpush1.msra.mxu0 0.0
    %123 = vmatprep.subr.mxu0 0.0
    %124 = vmatpush1.msra.mxu0 0.0
    %125 = vmatprep.subr.mxu0 0.0
    %126 = vmatpush1.msra.mxu0 0.0
    %127 = vmatprep.subr.mxu0 0.0
    %128 = vmatpush1.msra.mxu0 0.0
    %129 = vmatprep.subr.mxu0 0.0
    %130 = vmatpush1.msra.mxu0 0.0
    %131 = vmatprep.subr.mxu0 0.0
    %132 = vmatpush1.msra.mxu0 0.0
    %133 = vmatprep.subr.mxu0 0.0
    %134 = vmatpush1.msra.mxu0 0.0
    %135 = vmatprep.subr.mxu0 0.0
    %136 = vmatpush1.msra.mxu0 0.0
    %137 = vmatprep.mubr.f32.mxu0 0.0
    %138 = vmatmul.mubr.f32.gmra.mrb[0].mxu0 %v48
    %v139 = vpop.f32.mrb[0].mxu0
    %v140 = vadd.f32 %v71, %v139
    %v141 = vpop.f32.mrb[0].mxu0
    %142 = vmatprep.mubr.f32.mxu0 0.0
    %143 = vmatmul.mubr.f32.gmra.mrb[0].mxu0 %v49
    %v144 = vpop.f32.mrb[0].mxu0
    %v145 = vadd.f32 %v71, %v144
    %v146 = vpop.f32.mrb[0].mxu0
    %147 = vdwg.mxu0
    %v148 = vmul.f32 %v140, 0.5
    %v149 = vmul.f32 %v145, 0.5
    %v150 = vmul.f32 %v140, 0.70710677
    %v151 = vmul.f32 %v145, 0.70710677
    %v152 = verf.f32.pop %v150
    %v153 = verf.f32.pop %v151
    %v154 = vadd.f32 %v152, 1.0
    %v155 = vadd.f32 %v153, 1.0
    %v156 = vmul.f32 %v148, %v154
    %v157 = vmul.f32 %v149, %v155
    %v158 = vld [vmem:[#allocation4] sm:$0xff]
    %v159 = vld [vmem:[#allocation4 + $0x8] sm:$0xff]
    %v160 = vld [vmem:[#allocation4 + $0x10] sm:$0xff]
    %v161 = vld [vmem:[#allocation4 + $0x18] sm:$0xff]
    %v162 = vld [vmem:[#allocation4 + $0x20] sm:$0xff]
    %v163 = vld [vmem:[#allocation4 + $0x28] sm:$0xff]
    %v164 = vld [vmem:[#allocation4 + $0x30] sm:$0xff]
    %v165 = vld [vmem:[#allocation4 + $0x38] sm:$0xff]
    %v166 = vld [vmem:[#allocation4 + $0x40] sm:$0xff]
    %v167 = vld [vmem:[#allocation4 + $0x48] sm:$0xff]
    %v168 = vld [vmem:[#allocation4 + $0x50] sm:$0xff]
    %v169 = vld [vmem:[#allocation4 + $0x58] sm:$0xff]
    %v170 = vld [vmem:[#allocation4 + $0x60] sm:$0xff]
    %v171 = vld [vmem:[#allocation4 + $0x68] sm:$0xff]
    %v172 = vld [vmem:[#allocation4 + $0x70] sm:$0xff]
    %v173 = vld [vmem:[#allocation4 + $0x78] sm:$0xff]
    %v174 = vld [vmem:[%s4] sm:$0x1]
    %v176 = vlaneseq
    %v177 = vshrl.u32 %v176, 7
    %v178 = vsub.s32 0, %v177
    %v179 = vrot.slane %v174, %v178
    %181 = vmatprep.subr.mxu0 0.0
    %182 = vmatpush1.msra.mxu0 %v158
    %183 = vmatprep.subr.mxu0 0.0
    %184 = vmatpush1.msra.mxu0 %v159
    %185 = vmatprep.subr.mxu0 0.0
    %186 = vmatpush1.msra.mxu0 %v160
    %187 = vmatprep.subr.mxu0 0.0
    %188 = vmatpush1.msra.mxu0 %v161
    %189 = vmatprep.subr.mxu0 0.0
    %190 = vmatpush1.msra.mxu0 %v162
    %191 = vmatprep.subr.mxu0 0.0
    %192 = vmatpush1.msra.mxu0 %v163
    %193 = vmatprep.subr.mxu0 0.0
    %194 = vmatpush1.msra.mxu0 %v164
    %195 = vmatprep.subr.mxu0 0.0
    %196 = vmatpush1.msra.mxu0 %v165
    %197 = vmatprep.subr.mxu0 0.0
    %198 = vmatpush1.msra.mxu0 %v166
    %199 = vmatprep.subr.mxu0 0.0
    %200 = vmatpush1.msra.mxu0 %v167
    %201 = vmatprep.subr.mxu0 0.0
    %202 = vmatpush1.msra.mxu0 %v168
    %203 = vmatprep.subr.mxu0 0.0
    %204 = vmatpush1.msra.mxu0 %v169
    %205 = vmatprep.subr.mxu0 0.0
    %206 = vmatpush1.msra.mxu0 %v170
    %207 = vmatprep.subr.mxu0 0.0
    %208 = vmatpush1.msra.mxu0 %v171
    %209 = vmatprep.subr.mxu0 0.0
    %210 = vmatpush1.msra.mxu0 %v172
    %211 = vmatprep.subr.mxu0 0.0
    %212 = vmatpush1.msra.mxu0 %v173
    %213 = vmatprep.subr.mxu0 0.0
    %214 = vmatpush1.msra.mxu0 0.0
    %215 = vmatprep.subr.mxu0 0.0
    %216 = vmatpush1.msra.mxu0 0.0
    %217 = vmatprep.subr.mxu0 0.0
    %218 = vmatpush1.msra.mxu0 0.0
    %219 = vmatprep.subr.mxu0 0.0
    %220 = vmatpush1.msra.mxu0 0.0
    %221 = vmatprep.subr.mxu0 0.0
    %222 = vmatpush1.msra.mxu0 0.0
    %223 = vmatprep.subr.mxu0 0.0
    %224 = vmatpush1.msra.mxu0 0.0
    %225 = vmatprep.subr.mxu0 0.0
    %226 = vmatpush1.msra.mxu0 0.0
    %227 = vmatprep.subr.mxu0 0.0
    %228 = vmatpush1.msra.mxu0 0.0
    %229 = vmatprep.subr.mxu0 0.0
    %230 = vmatpush1.msra.mxu0 0.0
    %231 = vmatprep.subr.mxu0 0.0
    %232 = vmatpush1.msra.mxu0 0.0
    %233 = vmatprep.subr.mxu0 0.0
    %234 = vmatpush1.msra.mxu0 0.0
    %235 = vmatprep.subr.mxu0 0.0
    %236 = vmatpush1.msra.mxu0 0.0
    %237 = vmatprep.subr.mxu0 0.0
    %238 = vmatpush1.msra.mxu0 0.0
    %239 = vmatprep.subr.mxu0 0.0
    %240 = vmatpush1.msra.mxu0 0.0
    %241 = vmatprep.subr.mxu0 0.0
    %242 = vmatpush1.msra.mxu0 0.0
    %243 = vmatprep.subr.mxu0 0.0
    %244 = vmatpush1.msra.mxu0 0.0
    %245 = vmatprep.mubr.f32.mxu0 0.0
    %246 = vmatmul.mubr.f32.gmra.mrb[0].mxu0 %v156
    %v247 = vpop.f32.mrb[0].mxu0
    %v248 = vadd.f32 %v179, %v247
    %v249 = vpop.f32.mrb[0].mxu0
    %250 = vmatprep.mubr.f32.mxu0 0.0
    %251 = vmatmul.mubr.f32.gmra.mrb[0].mxu0 %v157
    %v252 = vpop.f32.mrb[0].mxu0
    %v253 = vadd.f32 %v179, %v252
    %v254 = vpop.f32.mrb[0].mxu0
    %255 = vdwg.mxu0
    %256 = vst [vmem:[%s5] sm:$0xff] %v248
    %257 = vst [vmem:[%s5 + $0x8] sm:$0xff] %v253
    // Predicated region
    $region30: #{mlp_forward.1} parent=1 // pred_check
      _
    $region31: #{mlp_forward.1} parent=1 // pred_check_branch
      %259 = sbr.rel (0) target = $region33
    $region32: #{mlp_forward.1} parent=1 // pred_region
      _
    $region33: #{mlp_forward.1} parent=1 // pred_fallthru
      _
    // Predicated region
    $region34: #{mlp_forward.1} parent=1 // pred_check
      _
    $region35: #{mlp_forward.1} parent=1 // pred_check_branch
      %261 = sbr.rel (0) target = $region37
    $region36: #{mlp_forward.1} parent=1 // pred_region
      _
    $region37: #{mlp_forward.1} parent=1 // pred_fallthru
      _
    %262 = vsyncpa [#allocation3], 1
    %263 = vsyncpa [#allocation5], 1

</llo_original>
